<compile_context>
chip_gen: v5e
topology: v5e:2x2
jax: 0.10.0
libtpu: 0.0.40
codegen_flags: <defaults>
</compile_context>

<pallas_src>
import jax
import jax.numpy as jnp
from jax.experimental import pallas as pl
from jax.experimental.pallas import tpu as pltpu


def actor_kernel(obs_ref,
                 w1_ref, b1_ref, gamma_ref, beta_ref,
                 w2_ref, b2_ref,
                 w3_ref, b3_ref,
                 w4_ref, b4_ref,
                 mu_ref):
    f32 = jnp.float32

    # ---- trunk: Linear(repr_dim -> feature_dim) ----
    obs = obs_ref[...]                                          # (tb, R) f32
    h = jnp.dot(obs, w1_ref[...], preferred_element_type=f32) + b1_ref[...]

    # ---- trunk: LayerNorm(feature_dim), eps matches torch default 1e-5 ----
    mean = jnp.mean(h, axis=-1, keepdims=True)
    centered = h - mean
    var = jnp.mean(centered * centered, axis=-1, keepdims=True)
    h = centered * jax.lax.rsqrt(var + 1e-5)
    h = h * gamma_ref[...] + beta_ref[...]

    # ---- trunk: Tanh ----
    h = jnp.tanh(h)

    # ---- policy: Linear -> ReLU -> Linear -> ReLU -> Linear ----
    x = jnp.dot(h, w2_ref[...], preferred_element_type=f32) + b2_ref[...]
    x = jnp.maximum(x, 0.0)
    x = jnp.dot(x, w3_ref[...], preferred_element_type=f32) + b3_ref[...]
    x = jnp.maximum(x, 0.0)
    mu = jnp.dot(x, w4_ref[...], preferred_element_type=f32) + b4_ref[...]

    # ---- mu = tanh(mu) ----
    mu_ref[...] = jnp.tanh(mu).astype(mu_ref.dtype)


def _round_up(x, m):
    return ((x + m - 1) // m) * m


def actor_forward(obs, params, *, std=None, tb=512):
    """Returns (mu, std) of the TruncatedNormal policy distribution."""
    (w1, b1, gamma, beta, w2, b2, w3, b3, w4, b4, log_std) = params
    B, R = obs.shape
    F = w1.shape[1]
    H = w2.shape[1]
    A = w4.shape[1]

    # Tile selection: big tiles to amortize grid-step overhead, but always
    # >= 2 (even) grid steps when B > 8 so both v7x TensorCores are used.
    if B <= 8:
        tb_eff = B                      # single full-array block
    else:
        tb_eff = min(tb, _round_up(pl.cdiv(B, 2), 8))
    grid = (pl.cdiv(B, tb_eff),)        # partial boundary block is fine:
                                        # rows are independent; padded rows
                                        # are never written back.

    # Weights/biases/LN params: full-array blocks with a constant index_map ->
    # DMA'd once and kept resident across batch tiles (no per-step re-DMA,
    # no double-buffering benefit needed).
    weights = (w1, b1, gamma, beta, w2, b2, w3, b3, w4, b4)
    weight_specs = [pl.BlockSpec(w.shape, lambda i: (0, 0)) for w in weights]

    weight_bytes = sum(int(w.size) * 4 for w in weights)
    cost = pl.CostEstimate(
        flops=2 * B * (R * F + F * H + H * H + H * A),
        transcendentals=B * (F + A),                  # tanh (trunk + head)
        bytes_accessed=B * R * 4 + weight_bytes + B * A * 4,
    )

    mu = pl.pallas_call(
        actor_kernel,
        grid=grid,
        in_specs=[pl.BlockSpec((tb_eff, R), lambda i: (i, 0))] + weight_specs,
        out_specs=pl.BlockSpec((tb_eff, A), lambda i: (i, 0)),
        out_shape=jax.ShapeDtypeStruct((B, A), jnp.float32),
        compiler_params=pltpu.CompilerParams(
            dimension_semantics=("parallel",)),
        cost_estimate=cost,
    )(obs, *weights)

    # std = exp(log_std) is obs-independent: computed once outside the kernel.
    if std is None:
        std_arr = jnp.exp(log_std)
    else:
        std_arr = jnp.asarray(std, jnp.float32)
    std_out = jnp.broadcast_to(std_arr, mu.shape)
    return mu, std_out


def init_params(key, repr_dim, feature_dim, hidden_dim, action_dim, log_std_val):
    """Deterministic synthetic init; all parameters stored in f32 (matches the
    PyTorch module's dtype)."""
    ks = jax.random.split(key, 4)

    def lin(k, fan_in, fan_out):
        kw, kb = jax.random.split(k)
        scale = 1.0 / jnp.sqrt(fan_in)
        w = jax.random.uniform(kw, (fan_in, fan_out), jnp.float32, -scale, scale)
        b = jax.random.uniform(kb, (1, fan_out), jnp.float32, -scale, scale)
        return w, b

    w1, b1 = lin(ks[0], repr_dim, feature_dim)
    gamma = jnp.ones((1, feature_dim), jnp.float32)   # LayerNorm weight
    beta = jnp.zeros((1, feature_dim), jnp.float32)   # LayerNorm bias
    w2, b2 = lin(ks[1], feature_dim, hidden_dim)
    w3, b3 = lin(ks[2], hidden_dim, hidden_dim)
    w4, b4 = lin(ks[3], hidden_dim, action_dim)
    log_std = jnp.full((1, action_dim), log_std_val, jnp.float32)
    return (w1, b1, gamma, beta, w2, b2, w3, b3, w4, b4, log_std)


def reference_forward(obs, params):
    (w1, b1, gamma, beta, w2, b2, w3, b3, w4, b4, log_std) = params
    h = obs @ w1 + b1
    mean = jnp.mean(h, axis=-1, keepdims=True)
    var = jnp.mean((h - mean) ** 2, axis=-1, keepdims=True)
    h = (h - mean) / jnp.sqrt(var + 1e-5) * gamma + beta
    h = jnp.tanh(h)
    x = jax.nn.relu(h @ w2 + b2)
    x = jax.nn.relu(x @ w3 + b3)
    mu = jnp.tanh(x @ w4 + b4)
    std = jnp.broadcast_to(jnp.exp(log_std), mu.shape)
    return mu, std


if __name__ == "__main__":
    repr_dim = 64    # flattened encoder output dim
    feature_dim = 32
    hidden_dim = 32
    action_dim = 4
    log_std_val = -0.5

    key = jax.random.PRNGKey(0)
    k_obs, k_par = jax.random.split(key)
    params = init_params(k_par, repr_dim, feature_dim, hidden_dim,
                         action_dim, log_std_val)

    # Case 1: ragged batch (exercises 2 grid steps + a partial boundary block).
    B1 = 100
    obs1 = jax.random.normal(k_obs, (B1, repr_dim), jnp.float32)
    mu1, std1 = actor_forward(obs1, params)
    jax.block_until_ready((mu1, std1))
    mu1_ref, std1_ref = reference_forward(obs1, params)
    assert mu1.shape == (B1, action_dim) and std1.shape == (B1, action_dim)
    assert jnp.allclose(mu1, mu1_ref, atol=2e-5, rtol=2e-5)
    assert jnp.allclose(std1, std1_ref, atol=1e-6, rtol=1e-6)

    # Case 2: tiny batch (single full-array block path).
    B2 = 2
    obs2 = jax.random.normal(jax.random.PRNGKey(1), (B2, repr_dim), jnp.float32)
    mu2, std2 = actor_forward(obs2, params)
    jax.block_until_ready((mu2, std2))
    mu2_ref, std2_ref = reference_forward(obs2, params)
    assert mu2.shape == (B2, action_dim) and std2.shape == (B2, action_dim)
    assert jnp.allclose(mu2, mu2_ref, atol=2e-5, rtol=2e-5)
    assert jnp.allclose(std2, std2_ref, atol=1e-6, rtol=1e-6)

    print("KERNEL_OK")
</pallas_src>

<mosaic_0001>
module attributes {stable_mosaic.version = 11 : i64} {
  func.func @actor_kernel(%arg0: i32, %arg1: memref<56x64xf32, #tpu.memory_space<vmem>>, %arg2: memref<64x32xf32, #tpu.memory_space<vmem>>, %arg3: memref<1x32xf32, #tpu.memory_space<vmem>>, %arg4: memref<1x32xf32, #tpu.memory_space<vmem>>, %arg5: memref<1x32xf32, #tpu.memory_space<vmem>>, %arg6: memref<32x32xf32, #tpu.memory_space<vmem>>, %arg7: memref<1x32xf32, #tpu.memory_space<vmem>>, %arg8: memref<32x32xf32, #tpu.memory_space<vmem>>, %arg9: memref<1x32xf32, #tpu.memory_space<vmem>>, %arg10: memref<32x4xf32, #tpu.memory_space<vmem>>, %arg11: memref<1x4xf32, #tpu.memory_space<vmem>>, %arg12: memref<56x4xf32, #tpu.memory_space<vmem>>) attributes {dimension_semantics = [#tpu.dimension_semantics<parallel>], iteration_bounds = array<i64: 2>, scalar_prefetch = 0 : i64, scratch_operands = 0 : i64, tpu.core_type = #tpu.core_type<tc>, window_params = [{transform_indices = @transform_0, window_bounds = array<i64: 56, 64>}, {pipeline_mode = #tpu.pipeline_mode<synchronous>, transform_indices = @transform_1, window_bounds = array<i64: 64, 32>}, {pipeline_mode = #tpu.pipeline_mode<synchronous>, transform_indices = @transform_2, window_bounds = array<i64: 1, 32>}, {pipeline_mode = #tpu.pipeline_mode<synchronous>, transform_indices = @transform_3, window_bounds = array<i64: 1, 32>}, {pipeline_mode = #tpu.pipeline_mode<synchronous>, transform_indices = @transform_4, window_bounds = array<i64: 1, 32>}, {pipeline_mode = #tpu.pipeline_mode<synchronous>, transform_indices = @transform_5, window_bounds = array<i64: 32, 32>}, {pipeline_mode = #tpu.pipeline_mode<synchronous>, transform_indices = @transform_6, window_bounds = array<i64: 1, 32>}, {pipeline_mode = #tpu.pipeline_mode<synchronous>, transform_indices = @transform_7, window_bounds = array<i64: 32, 32>}, {pipeline_mode = #tpu.pipeline_mode<synchronous>, transform_indices = @transform_8, window_bounds = array<i64: 1, 32>}, {pipeline_mode = #tpu.pipeline_mode<synchronous>, transform_indices = @transform_9, window_bounds = array<i64: 32, 4>}, {pipeline_mode = #tpu.pipeline_mode<synchronous>, transform_indices = @transform_10, window_bounds = array<i64: 1, 4>}, {transform_indices = @transform_11, window_bounds = array<i64: 56, 4>}]} {
    %c0 = arith.constant 0 : index
    %c0_0 = arith.constant 0 : index
    %0 = vector.load %arg1[%c0, %c0_0] : memref<56x64xf32, #tpu.memory_space<vmem>>, vector<56x64xf32>
    %c0_1 = arith.constant 0 : index
    %c0_2 = arith.constant 0 : index
    %1 = vector.load %arg2[%c0_1, %c0_2] : memref<64x32xf32, #tpu.memory_space<vmem>>, vector<64x32xf32>
    %cst = arith.constant dense<0.000000e+00> : vector<56x32xf32>
    %2 = tpu.matmul %0, %1, %cst {dimension_numbers = #tpu.dot_dimension_numbers<[1], [0], [0], [1], [0, 0, 1, 1], [], []>} : vector<56x64xf32>, vector<64x32xf32>, vector<56x32xf32> -> vector<56x32xf32>
    %c0_3 = arith.constant 0 : index
    %c0_4 = arith.constant 0 : index
    %3 = vector.load %arg3[%c0_3, %c0_4] : memref<1x32xf32, #tpu.memory_space<vmem>>, vector<1x32xf32>
    %4 = vector.broadcast %3 : vector<1x32xf32> to vector<56x32xf32>
    %5 = arith.addf %2, %4 : vector<56x32xf32>
    %cst_5 = arith.constant dense<0.000000e+00> : vector<56xf32>
    %6 = vector.multi_reduction <add>, %5, %cst_5 [1] : vector<56x32xf32> to vector<56xf32>
    %7 = vector.shape_cast %6 : vector<56xf32> to vector<56x1xf32>
    %cst_6 = arith.constant 3.200000e+01 : f32
    %8 = vector.broadcast %cst_6 : f32 to vector<56x1xf32>
    %9 = arith.divf %7, %8 : vector<56x1xf32>
    %10 = vector.broadcast %9 : vector<56x1xf32> to vector<56x32xf32>
    %11 = arith.subf %5, %10 : vector<56x32xf32>
    %12 = arith.mulf %11, %11 : vector<56x32xf32>
    %cst_7 = arith.constant dense<0.000000e+00> : vector<56xf32>
    %13 = vector.multi_reduction <add>, %12, %cst_7 [1] : vector<56x32xf32> to vector<56xf32>
    %14 = vector.shape_cast %13 : vector<56xf32> to vector<56x1xf32>
    %cst_8 = arith.constant 3.200000e+01 : f32
    %15 = vector.broadcast %cst_8 : f32 to vector<56x1xf32>
    %16 = arith.divf %14, %15 : vector<56x1xf32>
    %cst_9 = arith.constant 9.99999974E-6 : f32
    %17 = vector.broadcast %cst_9 : f32 to vector<56x1xf32>
    %18 = arith.addf %16, %17 : vector<56x1xf32>
    %19 = math.rsqrt %18 : vector<56x1xf32>
    %20 = vector.broadcast %19 : vector<56x1xf32> to vector<56x32xf32>
    %21 = arith.mulf %11, %20 : vector<56x32xf32>
    %c0_10 = arith.constant 0 : index
    %c0_11 = arith.constant 0 : index
    %22 = vector.load %arg4[%c0_10, %c0_11] : memref<1x32xf32, #tpu.memory_space<vmem>>, vector<1x32xf32>
    %23 = vector.broadcast %22 : vector<1x32xf32> to vector<56x32xf32>
    %24 = arith.mulf %21, %23 : vector<56x32xf32>
    %c0_12 = arith.constant 0 : index
    %c0_13 = arith.constant 0 : index
    %25 = vector.load %arg5[%c0_12, %c0_13] : memref<1x32xf32, #tpu.memory_space<vmem>>, vector<1x32xf32>
    %26 = vector.broadcast %25 : vector<1x32xf32> to vector<56x32xf32>
    %27 = arith.addf %24, %26 : vector<56x32xf32>
    %28 = math.tanh %27 : vector<56x32xf32>
    %c0_14 = arith.constant 0 : index
    %c0_15 = arith.constant 0 : index
    %29 = vector.load %arg6[%c0_14, %c0_15] : memref<32x32xf32, #tpu.memory_space<vmem>>, vector<32x32xf32>
    %cst_16 = arith.constant dense<0.000000e+00> : vector<56x32xf32>
    %30 = tpu.matmul %28, %29, %cst_16 {dimension_numbers = #tpu.dot_dimension_numbers<[1], [0], [0], [1], [0, 0, 1, 1], [], []>} : vector<56x32xf32>, vector<32x32xf32>, vector<56x32xf32> -> vector<56x32xf32>
    %c0_17 = arith.constant 0 : index
    %c0_18 = arith.constant 0 : index
    %31 = vector.load %arg7[%c0_17, %c0_18] : memref<1x32xf32, #tpu.memory_space<vmem>>, vector<1x32xf32>
    %32 = vector.broadcast %31 : vector<1x32xf32> to vector<56x32xf32>
    %33 = arith.addf %30, %32 : vector<56x32xf32>
    %cst_19 = arith.constant 0.000000e+00 : f32
    %34 = vector.broadcast %cst_19 : f32 to vector<56x32xf32>
    %35 = arith.maximumf %33, %34 : vector<56x32xf32>
    %c0_20 = arith.constant 0 : index
    %c0_21 = arith.constant 0 : index
    %36 = vector.load %arg8[%c0_20, %c0_21] : memref<32x32xf32, #tpu.memory_space<vmem>>, vector<32x32xf32>
    %cst_22 = arith.constant dense<0.000000e+00> : vector<56x32xf32>
    %37 = tpu.matmul %35, %36, %cst_22 {dimension_numbers = #tpu.dot_dimension_numbers<[1], [0], [0], [1], [0, 0, 1, 1], [], []>} : vector<56x32xf32>, vector<32x32xf32>, vector<56x32xf32> -> vector<56x32xf32>
    %c0_23 = arith.constant 0 : index
    %c0_24 = arith.constant 0 : index
    %38 = vector.load %arg9[%c0_23, %c0_24] : memref<1x32xf32, #tpu.memory_space<vmem>>, vector<1x32xf32>
    %39 = vector.broadcast %38 : vector<1x32xf32> to vector<56x32xf32>
    %40 = arith.addf %37, %39 : vector<56x32xf32>
    %cst_25 = arith.constant 0.000000e+00 : f32
    %41 = vector.broadcast %cst_25 : f32 to vector<56x32xf32>
    %42 = arith.maximumf %40, %41 : vector<56x32xf32>
    %c0_26 = arith.constant 0 : index
    %c0_27 = arith.constant 0 : index
    %43 = vector.load %arg10[%c0_26, %c0_27] : memref<32x4xf32, #tpu.memory_space<vmem>>, vector<32x4xf32>
    %cst_28 = arith.constant dense<0.000000e+00> : vector<56x4xf32>
    %44 = tpu.matmul %42, %43, %cst_28 {dimension_numbers = #tpu.dot_dimension_numbers<[1], [0], [0], [1], [0, 0, 1, 1], [], []>} : vector<56x32xf32>, vector<32x4xf32>, vector<56x4xf32> -> vector<56x4xf32>
    %c0_29 = arith.constant 0 : index
    %c0_30 = arith.constant 0 : index
    %45 = vector.load %arg11[%c0_29, %c0_30] : memref<1x4xf32, #tpu.memory_space<vmem>>, vector<1x4xf32>
    %46 = vector.broadcast %45 : vector<1x4xf32> to vector<56x4xf32>
    %47 = arith.addf %44, %46 : vector<56x4xf32>
    %48 = math.tanh %47 : vector<56x4xf32>
    %c0_31 = arith.constant 0 : index
    %c0_32 = arith.constant 0 : index
    %49 = vector.load %arg12[%c0_31, %c0_32] : memref<56x4xf32, #tpu.memory_space<vmem>>, vector<56x4xf32>
    tpu.vector_store %arg12[%c0_31, %c0_32], %48 {strides = array<i32>} : memref<56x4xf32, #tpu.memory_space<vmem>>, vector<56x4xf32>,
    return
  }
  func.func @transform_0(%arg0: i32) -> (i32, i32) {
    %c0_i32 = arith.constant 0 : i32
    %c0_i32_0 = arith.constant 0 : i32
    return %arg0, %c0_i32 : i32, i32
  }
  func.func @transform_1(%arg0: i32) -> (i32, i32) {
    %c0_i32 = arith.constant 0 : i32
    %c0_i32_0 = arith.constant 0 : i32
    %c0_i32_1 = arith.constant 0 : i32
    return %c0_i32, %c0_i32_0 : i32, i32
  }
  func.func @transform_2(%arg0: i32) -> (i32, i32) {
    %c0_i32 = arith.constant 0 : i32
    %c0_i32_0 = arith.constant 0 : i32
    %c0_i32_1 = arith.constant 0 : i32
    return %c0_i32, %c0_i32_0 : i32, i32
  }
  func.func @transform_3(%arg0: i32) -> (i32, i32) {
    %c0_i32 = arith.constant 0 : i32
    %c0_i32_0 = arith.constant 0 : i32
    %c0_i32_1 = arith.constant 0 : i32
    return %c0_i32, %c0_i32_0 : i32, i32
  }
  func.func @transform_4(%arg0: i32) -> (i32, i32) {
    %c0_i32 = arith.constant 0 : i32
    %c0_i32_0 = arith.constant 0 : i32
    %c0_i32_1 = arith.constant 0 : i32
    return %c0_i32, %c0_i32_0 : i32, i32
  }
  func.func @transform_5(%arg0: i32) -> (i32, i32) {
    %c0_i32 = arith.constant 0 : i32
    %c0_i32_0 = arith.constant 0 : i32
    %c0_i32_1 = arith.constant 0 : i32
    return %c0_i32, %c0_i32_0 : i32, i32
  }
  func.func @transform_6(%arg0: i32) -> (i32, i32) {
    %c0_i32 = arith.constant 0 : i32
    %c0_i32_0 = arith.constant 0 : i32
    %c0_i32_1 = arith.constant 0 : i32
    return %c0_i32, %c0_i32_0 : i32, i32
  }
  func.func @transform_7(%arg0: i32) -> (i32, i32) {
    %c0_i32 = arith.constant 0 : i32
    %c0_i32_0 = arith.constant 0 : i32
    %c0_i32_1 = arith.constant 0 : i32
    return %c0_i32, %c0_i32_0 : i32, i32
  }
  func.func @transform_8(%arg0: i32) -> (i32, i32) {
    %c0_i32 = arith.constant 0 : i32
    %c0_i32_0 = arith.constant 0 : i32
    %c0_i32_1 = arith.constant 0 : i32
    return %c0_i32, %c0_i32_0 : i32, i32
  }
  func.func @transform_9(%arg0: i32) -> (i32, i32) {
    %c0_i32 = arith.constant 0 : i32
    %c0_i32_0 = arith.constant 0 : i32
    %c0_i32_1 = arith.constant 0 : i32
    return %c0_i32, %c0_i32_0 : i32, i32
  }
  func.func @transform_10(%arg0: i32) -> (i32, i32) {
    %c0_i32 = arith.constant 0 : i32
    %c0_i32_0 = arith.constant 0 : i32
    %c0_i32_1 = arith.constant 0 : i32
    return %c0_i32, %c0_i32_0 : i32, i32
  }
  func.func @transform_11(%arg0: i32) -> (i32, i32) {
    %c0_i32 = arith.constant 0 : i32
    %c0_i32_0 = arith.constant 0 : i32
    return %arg0, %c0_i32 : i32, i32
  }
}

</mosaic_0001>

<llo_original>
// kernel: tpu_custom_call.1
$region0: #{tpu_custom_call.1}
  #allocation0 [shape = 'u32[]', space=smem, size = 0x4, offset = 0x4, fixed_abs, tag = 'smem constant byte address 0x4 - core index']
  #allocation1 [shape = 'u32[72,128]{1,0:T(1,128)}', space=vmem, size = 0x9000, scoped, tag = 'internal scratch']
  %s0 = inlined_call_operand.vmem [shape: f32[100,64], index: 0, kind: input, shape index: {}]
  %s1 = inlined_call_operand.vmem [shape: f32[64,32], index: 1, kind: input, shape index: {}]
  %s2 = inlined_call_operand.vmem [shape: f32[1,32], index: 2, kind: input, shape index: {}]
  %s3 = inlined_call_operand.vmem [shape: f32[1,32], index: 3, kind: input, shape index: {}]
  %s4 = inlined_call_operand.vmem [shape: f32[1,32], index: 4, kind: input, shape index: {}]
  %s5 = inlined_call_operand.vmem [shape: f32[32,32], index: 5, kind: input, shape index: {}]
  %s6 = inlined_call_operand.vmem [shape: f32[1,32], index: 6, kind: input, shape index: {}]
  %s7 = inlined_call_operand.vmem [shape: f32[32,32], index: 7, kind: input, shape index: {}]
  %s8 = inlined_call_operand.vmem [shape: f32[1,32], index: 8, kind: input, shape index: {}]
  %s9 = inlined_call_operand.vmem [shape: f32[32,4], index: 9, kind: input, shape index: {}]
  %s10 = inlined_call_operand.vmem [shape: f32[1,4], index: 10, kind: input, shape index: {}]
  %s11 = inlined_call_operand.vmem [shape: f32[100,4], index: 11, kind: output, shape index: {}]
  %s12 = sld [smem:[#allocation0]]
  $region125: #{tpu_custom_call.1} parent=0
    _
  %s14 = ssub.s32 1, %s12
  %s15 = scalar_select 0, %s14, %s12
  $region1: #{tpu_custom_call.1} parent=0
    #allocation2 [shape = 'u8[57344]{0}', space=vmem, size = 0xe000, scoped, tag = 'output window, operand 0']
    loop: start=0, step=1, limit=4
    $region2: #{tpu_custom_call.1} parent=1 // loop_pre_header
      _
    $region3: #{tpu_custom_call.1} parent=1 // loop_header
      %s17 = sphi 0, %s21
      %p18 = scmp.ge.s32.totalorder %s17, 4
      %s27 = sphi 0, %s29
      %s30 = sphi 0, %s27
      %s31 = sphi 0, %s30
      %s47 = sphi 0, %s31
      %s51 = sphi 0, %s51
      %s53 = sphi 0, %s51
      %s54 = sphi 0, %s53
      %s68 = sphi 0, %s54
      %s72 = sphi 0, %s72
      %s74 = sphi 0, %s72
      %s75 = sphi 0, %s74
      %s89 = sphi 0, %s75
      %s93 = sphi 0, %s93
      %s95 = sphi 0, %s93
      %s96 = sphi 0, %s95
      %s110 = sphi 0, %s96
      %s114 = sphi 0, %s114
      %s116 = sphi 0, %s114
      %s117 = sphi 0, %s116
      %s131 = sphi 0, %s117
      %s135 = sphi 0, %s135
      %s137 = sphi 0, %s135
      %s138 = sphi 0, %s137
      %s152 = sphi 0, %s138
      %s156 = sphi 0, %s156
      %s158 = sphi 0, %s156
      %s159 = sphi 0, %s158
      %s173 = sphi 0, %s159
      %s177 = sphi 0, %s177
      %s179 = sphi 0, %s177
      %s180 = sphi 0, %s179
      %s194 = sphi 0, %s180
      %s198 = sphi 0, %s198
      %s200 = sphi 0, %s198
      %s201 = sphi 0, %s200
      %s215 = sphi 0, %s201
      %s219 = sphi 0, %s219
      %s221 = sphi 0, %s219
      %s222 = sphi 0, %s221
      %s236 = sphi 0, %s222
      %s240 = sphi 0, %s240
      %s242 = sphi 0, %s240
      %s243 = sphi 0, %s242
      %s257 = sphi 0, %s243
      %s263 = sphi 0, %s265
      %s266 = sphi 0, %s263
      %s267 = sphi 0, %s266
      %s283 = sphi 0, %s267
    $region4: #{tpu_custom_call.1} parent=1 // loop_header_branch
      %20 = sbr.rel (%p18) target = $region8
    $region5: #{tpu_custom_call.1} parent=1 // loop_body
      %s22 = ssub.s32 %s17, 1
      %s23 = ssub.s32 %s17, 2
      %s24 = sadd.s32 %s17, 1
      %s25 = ssub.s32 %s17, %s24
      %p26 = scmp.eq.s32.totalorder %s25, 0
      %s28 = sadd.s32 %s27, 1
      %s29 = scalar_select %p26, %s27, %s28
      %p32 = pneg %p26
      %p33 = scmp.eq.s32.totalorder %s17, 1
      %p34 = por %p32, %p33
      %p35 = scmp.ne.s32.totalorder %s27, %s30
      %p36 = scmp.eq.s32.totalorder %s17, 0
      %p37 = por %p35, %p36
      %p38 = scmp.ne.s32.totalorder %s27, %s30
      %p39 = scmp.eq.s32.totalorder %s22, 1
      %p40 = por %p38, %p39
      %p41 = scmp.ne.s32.totalorder %s30, %s31
      %p42 = scmp.eq.s32.totalorder %s22, 0
      %p43 = por %p41, %p42
      %p44 = scmp.ne.s32.totalorder %s30, %s31
      %p45 = scmp.eq.s32.totalorder %s23, 1
      %p46 = por %p44, %p45
      %p48 = scmp.ne.s32.totalorder %s31, %s47
      %p49 = scmp.eq.s32.totalorder %s23, 0
      %p50 = por %p48, %p49
      %s52 = sadd.s32 %s51, 1
      %p55 = scmp.eq.s32.totalorder %s17, 1
      %p56 = scmp.ne.s32.totalorder %s51, %s53
      %p57 = scmp.eq.s32.totalorder %s17, 0
      %p58 = por %p56, %p57
      %p59 = scmp.ne.s32.totalorder %s51, %s53
      %p60 = scmp.eq.s32.totalorder %s22, 1
      %p61 = por %p59, %p60
      %p62 = scmp.ne.s32.totalorder %s53, %s54
      %p63 = scmp.eq.s32.totalorder %s22, 0
      %p64 = por %p62, %p63
      %p65 = scmp.ne.s32.totalorder %s53, %s54
      %p66 = scmp.eq.s32.totalorder %s23, 1
      %p67 = por %p65, %p66
      %p69 = scmp.ne.s32.totalorder %s54, %s68
      %p70 = scmp.eq.s32.totalorder %s23, 0
      %p71 = por %p69, %p70
      %s73 = sadd.s32 %s72, 1
      %p76 = scmp.eq.s32.totalorder %s17, 1
      %p77 = scmp.ne.s32.totalorder %s72, %s74
      %p78 = scmp.eq.s32.totalorder %s17, 0
      %p79 = por %p77, %p78
      %p80 = scmp.ne.s32.totalorder %s72, %s74
      %p81 = scmp.eq.s32.totalorder %s22, 1
      %p82 = por %p80, %p81
      %p83 = scmp.ne.s32.totalorder %s74, %s75
      %p84 = scmp.eq.s32.totalorder %s22, 0
      %p85 = por %p83, %p84
      %p86 = scmp.ne.s32.totalorder %s74, %s75
      %p87 = scmp.eq.s32.totalorder %s23, 1
      %p88 = por %p86, %p87
      %p90 = scmp.ne.s32.totalorder %s75, %s89
      %p91 = scmp.eq.s32.totalorder %s23, 0
      %p92 = por %p90, %p91
      %s94 = sadd.s32 %s93, 1
      %p97 = scmp.eq.s32.totalorder %s17, 1
      %p98 = scmp.ne.s32.totalorder %s93, %s95
      %p99 = scmp.eq.s32.totalorder %s17, 0
      %p100 = por %p98, %p99
      %p101 = scmp.ne.s32.totalorder %s93, %s95
      %p102 = scmp.eq.s32.totalorder %s22, 1
      %p103 = por %p101, %p102
      %p104 = scmp.ne.s32.totalorder %s95, %s96
      %p105 = scmp.eq.s32.totalorder %s22, 0
      %p106 = por %p104, %p105
      %p107 = scmp.ne.s32.totalorder %s95, %s96
      %p108 = scmp.eq.s32.totalorder %s23, 1
      %p109 = por %p107, %p108
      %p111 = scmp.ne.s32.totalorder %s96, %s110
      %p112 = scmp.eq.s32.totalorder %s23, 0
      %p113 = por %p111, %p112
      %s115 = sadd.s32 %s114, 1
      %p118 = scmp.eq.s32.totalorder %s17, 1
      %p119 = scmp.ne.s32.totalorder %s114, %s116
      %p120 = scmp.eq.s32.totalorder %s17, 0
      %p121 = por %p119, %p120
      %p122 = scmp.ne.s32.totalorder %s114, %s116
      %p123 = scmp.eq.s32.totalorder %s22, 1
      %p124 = por %p122, %p123
      %p125 = scmp.ne.s32.totalorder %s116, %s117
      %p126 = scmp.eq.s32.totalorder %s22, 0
      %p127 = por %p125, %p126
      %p128 = scmp.ne.s32.totalorder %s116, %s117
      %p129 = scmp.eq.s32.totalorder %s23, 1
      %p130 = por %p128, %p129
      %p132 = scmp.ne.s32.totalorder %s117, %s131
      %p133 = scmp.eq.s32.totalorder %s23, 0
      %p134 = por %p132, %p133
      %s136 = sadd.s32 %s135, 1
      %p139 = scmp.eq.s32.totalorder %s17, 1
      %p140 = scmp.ne.s32.totalorder %s135, %s137
      %p141 = scmp.eq.s32.totalorder %s17, 0
      %p142 = por %p140, %p141
      %p143 = scmp.ne.s32.totalorder %s135, %s137
      %p144 = scmp.eq.s32.totalorder %s22, 1
      %p145 = por %p143, %p144
      %p146 = scmp.ne.s32.totalorder %s137, %s138
      %p147 = scmp.eq.s32.totalorder %s22, 0
      %p148 = por %p146, %p147
      %p149 = scmp.ne.s32.totalorder %s137, %s138
      %p150 = scmp.eq.s32.totalorder %s23, 1
      %p151 = por %p149, %p150
      %p153 = scmp.ne.s32.totalorder %s138, %s152
      %p154 = scmp.eq.s32.totalorder %s23, 0
      %p155 = por %p153, %p154
      %s157 = sadd.s32 %s156, 1
      %p160 = scmp.eq.s32.totalorder %s17, 1
      %p161 = scmp.ne.s32.totalorder %s156, %s158
      %p162 = scmp.eq.s32.totalorder %s17, 0
      %p163 = por %p161, %p162
      %p164 = scmp.ne.s32.totalorder %s156, %s158
      %p165 = scmp.eq.s32.totalorder %s22, 1
      %p166 = por %p164, %p165
      %p167 = scmp.ne.s32.totalorder %s158, %s159
      %p168 = scmp.eq.s32.totalorder %s22, 0
      %p169 = por %p167, %p168
      %p170 = scmp.ne.s32.totalorder %s158, %s159
      %p171 = scmp.eq.s32.totalorder %s23, 1
      %p172 = por %p170, %p171
      %p174 = scmp.ne.s32.totalorder %s159, %s173
      %p175 = scmp.eq.s32.totalorder %s23, 0
      %p176 = por %p174, %p175
      %s178 = sadd.s32 %s177, 1
      %p181 = scmp.eq.s32.totalorder %s17, 1
      %p182 = scmp.ne.s32.totalorder %s177, %s179
      %p183 = scmp.eq.s32.totalorder %s17, 0
      %p184 = por %p182, %p183
      %p185 = scmp.ne.s32.totalorder %s177, %s179
      %p186 = scmp.eq.s32.totalorder %s22, 1
      %p187 = por %p185, %p186
      %p188 = scmp.ne.s32.totalorder %s179, %s180
      %p189 = scmp.eq.s32.totalorder %s22, 0
      %p190 = por %p188, %p189
      %p191 = scmp.ne.s32.totalorder %s179, %s180
      %p192 = scmp.eq.s32.totalorder %s23, 1
      %p193 = por %p191, %p192
      %p195 = scmp.ne.s32.totalorder %s180, %s194
      %p196 = scmp.eq.s32.totalorder %s23, 0
      %p197 = por %p195, %p196
      %s199 = sadd.s32 %s198, 1
      %p202 = scmp.eq.s32.totalorder %s17, 1
      %p203 = scmp.ne.s32.totalorder %s198, %s200
      %p204 = scmp.eq.s32.totalorder %s17, 0
      %p205 = por %p203, %p204
      %p206 = scmp.ne.s32.totalorder %s198, %s200
      %p207 = scmp.eq.s32.totalorder %s22, 1
      %p208 = por %p206, %p207
      %p209 = scmp.ne.s32.totalorder %s200, %s201
      %p210 = scmp.eq.s32.totalorder %s22, 0
      %p211 = por %p209, %p210
      %p212 = scmp.ne.s32.totalorder %s200, %s201
      %p213 = scmp.eq.s32.totalorder %s23, 1
      %p214 = por %p212, %p213
      %p216 = scmp.ne.s32.totalorder %s201, %s215
      %p217 = scmp.eq.s32.totalorder %s23, 0
      %p218 = por %p216, %p217
      %s220 = sadd.s32 %s219, 1
      %p223 = scmp.eq.s32.totalorder %s17, 1
      %p224 = scmp.ne.s32.totalorder %s219, %s221
      %p225 = scmp.eq.s32.totalorder %s17, 0
      %p226 = por %p224, %p225
      %p227 = scmp.ne.s32.totalorder %s219, %s221
      %p228 = scmp.eq.s32.totalorder %s22, 1
      %p229 = por %p227, %p228
      %p230 = scmp.ne.s32.totalorder %s221, %s222
      %p231 = scmp.eq.s32.totalorder %s22, 0
      %p232 = por %p230, %p231
      %p233 = scmp.ne.s32.totalorder %s221, %s222
      %p234 = scmp.eq.s32.totalorder %s23, 1
      %p235 = por %p233, %p234
      %p237 = scmp.ne.s32.totalorder %s222, %s236
      %p238 = scmp.eq.s32.totalorder %s23, 0
      %p239 = por %p237, %p238
      %s241 = sadd.s32 %s240, 1
      %p244 = scmp.eq.s32.totalorder %s17, 1
      %p245 = scmp.ne.s32.totalorder %s240, %s242
      %p246 = scmp.eq.s32.totalorder %s17, 0
      %p247 = por %p245, %p246
      %p248 = scmp.ne.s32.totalorder %s240, %s242
      %p249 = scmp.eq.s32.totalorder %s22, 1
      %p250 = por %p248, %p249
      %p251 = scmp.ne.s32.totalorder %s242, %s243
      %p252 = scmp.eq.s32.totalorder %s22, 0
      %p253 = por %p251, %p252
      %p254 = scmp.ne.s32.totalorder %s242, %s243
      %p255 = scmp.eq.s32.totalorder %s23, 1
      %p256 = por %p254, %p255
      %p258 = scmp.ne.s32.totalorder %s243, %s257
      %p259 = scmp.eq.s32.totalorder %s23, 0
      %p260 = por %p258, %p259
      %s261 = ssub.s32 %s17, %s24
      %p262 = scmp.eq.s32.totalorder %s261, 0
      %s264 = sadd.s32 %s263, 1
      %s265 = scalar_select %p262, %s263, %s264
      %p268 = pneg %p262
      %p269 = scmp.eq.s32.totalorder %s17, 1
      %p270 = por %p268, %p269
      %p271 = scmp.ne.s32.totalorder %s263, %s266
      %p272 = scmp.eq.s32.totalorder %s17, 0
      %p273 = por %p271, %p272
      %p274 = scmp.ne.s32.totalorder %s263, %s266
      %p275 = scmp.eq.s32.totalorder %s22, 1
      %p276 = por %p274, %p275
      %p277 = scmp.ne.s32.totalorder %s266, %s267
      %p278 = scmp.eq.s32.totalorder %s22, 0
      %p279 = por %p277, %p278
      %p280 = scmp.ne.s32.totalorder %s266, %s267
      %p281 = scmp.eq.s32.totalorder %s23, 1
      %p282 = por %p280, %p281
      %p284 = scmp.ne.s32.totalorder %s267, %s283
      %p285 = scmp.eq.s32.totalorder %s23, 0
      %p286 = por %p284, %p285
      %p287 = scmp.le.s32.totalorder 1, %s17
      %p288 = scmp.lt.s32.totalorder %s17, 3
      %p289 = pnand %p287, %p288
      %p290 = pneg %p289
      // Predicated region
      $region9: #{tpu_custom_call.1} parent=5 // pred_check
        _
      $region10: #{tpu_custom_call.1} parent=5 // pred_check_branch
        %292 = sbr.rel (%p289) target = $region12
      $region11: #{tpu_custom_call.1} parent=5 // pred_region
        %s293 = ssub.s32 %s17, 1
        // Predicated region
        $region13: #{tpu_custom_call.1} parent=11 // pred_check
          %p294 = pneg %p64
        $region14: #{tpu_custom_call.1} parent=11 // pred_check_branch
          %296 = sbr.rel (%p294) target = $region16
        $region15: #{tpu_custom_call.1} parent=11 // pred_region
          _
        $region16: #{tpu_custom_call.1} parent=11 // pred_fallthru
          _
        // Predicated region
        $region17: #{tpu_custom_call.1} parent=11 // pred_check
          %p297 = pneg %p85
        $region18: #{tpu_custom_call.1} parent=11 // pred_check_branch
          %299 = sbr.rel (%p297) target = $region20
        $region19: #{tpu_custom_call.1} parent=11 // pred_region
          _
        $region20: #{tpu_custom_call.1} parent=11 // pred_fallthru
          _
        // Predicated region
        $region21: #{tpu_custom_call.1} parent=11 // pred_check
          %p300 = pneg %p106
        $region22: #{tpu_custom_call.1} parent=11 // pred_check_branch
          %302 = sbr.rel (%p300) target = $region24
        $region23: #{tpu_custom_call.1} parent=11 // pred_region
          _
        $region24: #{tpu_custom_call.1} parent=11 // pred_fallthru
          _
        // Predicated region
        $region25: #{tpu_custom_call.1} parent=11 // pred_check
          %p303 = pneg %p127
        $region26: #{tpu_custom_call.1} parent=11 // pred_check_branch
          %305 = sbr.rel (%p303) target = $region28
        $region27: #{tpu_custom_call.1} parent=11 // pred_region
          _
        $region28: #{tpu_custom_call.1} parent=11 // pred_fallthru
          _
        // Predicated region
        $region29: #{tpu_custom_call.1} parent=11 // pred_check
          %p306 = pneg %p148
        $region30: #{tpu_custom_call.1} parent=11 // pred_check_branch
          %308 = sbr.rel (%p306) target = $region32
        $region31: #{tpu_custom_call.1} parent=11 // pred_region
          _
        $region32: #{tpu_custom_call.1} parent=11 // pred_fallthru
          _
        // Predicated region
        $region33: #{tpu_custom_call.1} parent=11 // pred_check
          %p309 = pneg %p169
        $region34: #{tpu_custom_call.1} parent=11 // pred_check_branch
          %311 = sbr.rel (%p309) target = $region36
        $region35: #{tpu_custom_call.1} parent=11 // pred_region
          _
        $region36: #{tpu_custom_call.1} parent=11 // pred_fallthru
          _
        // Predicated region
        $region37: #{tpu_custom_call.1} parent=11 // pred_check
          %p312 = pneg %p190
        $region38: #{tpu_custom_call.1} parent=11 // pred_check_branch
          %314 = sbr.rel (%p312) target = $region40
        $region39: #{tpu_custom_call.1} parent=11 // pred_region
          _
        $region40: #{tpu_custom_call.1} parent=11 // pred_fallthru
          _
        // Predicated region
        $region41: #{tpu_custom_call.1} parent=11 // pred_check
          %p315 = pneg %p211
        $region42: #{tpu_custom_call.1} parent=11 // pred_check_branch
          %317 = sbr.rel (%p315) target = $region44
        $region43: #{tpu_custom_call.1} parent=11 // pred_region
          _
        $region44: #{tpu_custom_call.1} parent=11 // pred_fallthru
          _
        // Predicated region
        $region45: #{tpu_custom_call.1} parent=11 // pred_check
          %p318 = pneg %p232
        $region46: #{tpu_custom_call.1} parent=11 // pred_check_branch
          %320 = sbr.rel (%p318) target = $region48
        $region47: #{tpu_custom_call.1} parent=11 // pred_region
          _
        $region48: #{tpu_custom_call.1} parent=11 // pred_fallthru
          _
        // Predicated region
        $region49: #{tpu_custom_call.1} parent=11 // pred_check
          %p321 = pneg %p253
        $region50: #{tpu_custom_call.1} parent=11 // pred_check_branch
          %323 = sbr.rel (%p321) target = $region52
        $region51: #{tpu_custom_call.1} parent=11 // pred_region
          _
        $region52: #{tpu_custom_call.1} parent=11 // pred_fallthru
          _
      $region12: #{tpu_custom_call.1} parent=5 // pred_fallthru
        _
      %p324 = scmp.lt.s32.totalorder %s17, 2
      // Predicated region
      $region53: #{tpu_custom_call.1} parent=5 // pred_check
        %p325 = pneg %p324
      $region54: #{tpu_custom_call.1} parent=5 // pred_check_branch
        %327 = sbr.rel (%p325) target = $region56
      $region55: #{tpu_custom_call.1} parent=5 // pred_region
        // Predicated region
        $region57: #{tpu_custom_call.1} parent=55 // pred_check
          %p328 = pneg %p37
        $region58: #{tpu_custom_call.1} parent=55 // pred_check_branch
          %330 = sbr.rel (%p328) target = $region60
        $region59: #{tpu_custom_call.1} parent=55 // pred_region
          %s331 = smul.u32 7, %s17
          %s332 = ssub.s32 13, %s331
          %p333 = scmp.lt.s32.totalorder %s332, 7
          %s334 = scalar_select %p333, %s332, 7
          %s335 = smul.u32 8, %s334
          %p336 = scmp.lt.s32.totalorder %s331, 12
          %s337 = scalar_select %p336, %s331, 12
          %s338 = smul.addr %s337, 8
          %s339 = scalar_lea.vmem %s0, %s338
          %s340 = smul.u32 7, %s17
          %s341 = ssub.s32 13, %s340
          %p342 = scmp.lt.s32.totalorder %s341, 7
          %s343 = scalar_select %p342, %s341, 7
          %s344 = smul.u32 8, %s343
        $region60: #{tpu_custom_call.1} parent=55 // pred_fallthru
          _
      $region56: #{tpu_custom_call.1} parent=5 // pred_fallthru
        _
      %p345 = scmp.le.s32.totalorder 1, %s17
      %p346 = scmp.lt.s32.totalorder %s17, 3
      %p347 = pnand %p345, %p346
      %p348 = pneg %p347
      // Predicated region
      $region61: #{tpu_custom_call.1} parent=5 // pred_check
        _
      $region62: #{tpu_custom_call.1} parent=5 // pred_check_branch
        %350 = sbr.rel (%p347) target = $region64
      $region63: #{tpu_custom_call.1} parent=5 // pred_region
        %s351 = ssub.s32 %s17, 1
        %s352 = smul.u32 7, %s22
        %s353 = ssub.s32 13, %s352
        %p354 = scmp.lt.s32.totalorder %s353, 7
        %s355 = scalar_select %p354, %s353, 7
        %s356 = smul.u32 8, %s355
        %p357 = scmp.lt.s32.totalorder %s352, 12
        %s358 = scalar_select %p357, %s352, 12
        %s359 = smul.addr %s358, 8
        %s360 = scalar_lea.vmem %s0, %s359
        %p361 = pneg %p43
        %p362 = pneg %p40
        %p363 = pneg %p64
        %p364 = pneg %p61
        %p365 = pneg %p85
        %p366 = pneg %p82
        %p367 = pneg %p106
        %p368 = pneg %p103
        %p369 = pneg %p127
        %p370 = pneg %p124
        %p371 = pneg %p148
        %p372 = pneg %p145
        %p373 = pneg %p169
        %p374 = pneg %p166
        %p375 = pneg %p190
        %p376 = pneg %p187
        %p377 = pneg %p211
        %p378 = pneg %p208
        %p379 = pneg %p232
        %p380 = pneg %p229
        %p381 = pneg %p253
        %p382 = pneg %p250
        %p383 = pneg %p279
        %p384 = pneg %p276
        %s385 = sand.u32 %s266, 1
        %s386 = sand.u32 %s266, 1
        %s387 = smul.addr %s386, 56
        %s388 = scalar_lea.vmem [#allocation2], %s387
        %s389 = smul.u32 7, %s22
        %s390 = ssub.s32 13, %s389
        %p391 = scmp.lt.s32.totalorder %s390, 7
        %s392 = scalar_select %p391, %s390, 7
        %s393 = smul.u32 8, %s392
        %p394 = scmp.lt.s32.totalorder %s389, 12
        %s395 = scalar_select %p394, %s389, 12
        %s396 = smul.addr %s395, 8
        %s397 = scalar_lea.vmem %s0, %s396
        %s398 = smul.u32 7, %s22
        %s399 = ssub.s32 13, %s398
        %p400 = scmp.lt.s32.totalorder %s399, 7
        %s401 = scalar_select %p400, %s399, 7
        %s402 = smul.u32 8, %s401
        %s403 = smul.u32 7, %s22
        %s404 = ssub.s32 13, %s403
        %p405 = scmp.lt.s32.totalorder %s404, 7
        %s406 = scalar_select %p405, %s404, 7
        %s407 = smul.u32 8, %s406
        %v408 = vld [vmem:[%s397] sm:$0xff]
        %v409 = vld [vmem:[%s397 + $0x8] sm:$0xff]
        %v410 = vld [vmem:[%s397 + $0x10] sm:$0xff]
        %v411 = vld [vmem:[%s397 + $0x18] sm:$0xff]
        %v412 = vld [vmem:[%s397 + $0x20] sm:$0xff]
        %v413 = vld [vmem:[%s397 + $0x28] sm:$0xff]
        %v414 = vld [vmem:[%s397 + $0x30] sm:$0xff]
        %v415 = vld [vmem:[%s1] sm:$0xff]
        %v416 = vld [vmem:[%s1 + $0x8] sm:$0xff]
        %v417 = vld [vmem:[%s1 + $0x10] sm:$0xff]
        %v418 = vld [vmem:[%s1 + $0x18] sm:$0xff]
        %v419 = vld [vmem:[%s1 + $0x20] sm:$0xff]
        %v420 = vld [vmem:[%s1 + $0x28] sm:$0xff]
        %v421 = vld [vmem:[%s1 + $0x30] sm:$0xff]
        %v422 = vld [vmem:[%s1 + $0x38] sm:$0xff]
        %v423 = vld [vmem:[%s2] sm:$0x1]
        %v425 = vperm.slane %v423, 0
        %vm427 = vcmask 523264
        %v429 = vsel %vm427, %v408, 0
        %v432 = vsel %vm427, %v409, 0
        %v435 = vsel %vm427, %v410, 0
        %v438 = vsel %vm427, %v411, 0
        %v441 = vsel %vm427, %v412, 0
        %v444 = vsel %vm427, %v413, 0
        %v447 = vsel %vm427, %v414, 0
        %449 = vmatpush.msra.mxu0 0.0
        %450 = vmatpush.msra.mxu0 0.0
        %451 = vmatpush.msra.mxu0 0.0
        %452 = vmatpush.msra.mxu0 0.0
        %453 = vmatpush.msra.mxu0 0.0
        %454 = vmatpush.msra.mxu0 0.0
        %455 = vmatpush.msra.mxu0 0.0
        %456 = vmatpush.msra.mxu0 0.0
        %457 = vmatpush.msra.mxu0 %v422
        %458 = vmatpush.msra.mxu0 %v421
        %459 = vmatpush.msra.mxu0 %v420
        %460 = vmatpush.msra.mxu0 %v419
        %461 = vmatpush.msra.mxu0 %v418
        %462 = vmatpush.msra.mxu0 %v417
        %463 = vmatpush.msra.mxu0 %v416
        %464 = vmatpush.msra.mxu0 %v415
        %465 = vmatmul.f32.gmra.mxu0 %v429
        %v466 = vpop.f32.mrf.mxu0
        %v467 = vadd.f32 %v425, %v466
        %468 = vmatmul.f32.gmra.mxu0 %v432
        %v469 = vpop.f32.mrf.mxu0
        %v470 = vadd.f32 %v425, %v469
        %471 = vmatmul.f32.gmra.mxu0 %v435
        %v472 = vpop.f32.mrf.mxu0
        %v473 = vadd.f32 %v425, %v472
        %474 = vmatmul.f32.gmra.mxu0 %v438
        %v475 = vpop.f32.mrf.mxu0
        %v476 = vadd.f32 %v425, %v475
        %477 = vmatmul.f32.gmra.mxu0 %v441
        %v478 = vpop.f32.mrf.mxu0
        %v479 = vadd.f32 %v425, %v478
        %480 = vmatmul.f32.gmra.mxu0 %v444
        %v481 = vpop.f32.mrf.mxu0
        %v482 = vadd.f32 %v425, %v481
        %483 = vmatmul.f32.gmra.mxu0 %v447
        %v484 = vpop.f32.mrf.mxu0
        %v485 = vadd.f32 %v425, %v484
        %486 = vdwg.mxu0
        %vm487 = vcmask 261120
        %v488 = vsel %vm487, %v467, 0.0
        %489 = vadd.xlane.f32.xlu0 %v488
        %v490 = vpop.xlane.xlu0 %489
        %v491 = vsel %vm487, %v470, 0.0
        %492 = vadd.xlane.f32.xlu0 %v491
        %v493 = vpop.xlane.xlu0 %492
        %v494 = vsel %vm487, %v473, 0.0
        %495 = vadd.xlane.f32.xlu0 %v494
        %v496 = vpop.xlane.xlu0 %495
        %v497 = vsel %vm487, %v476, 0.0
        %498 = vadd.xlane.f32.xlu0 %v497
        %v499 = vpop.xlane.xlu0 %498
        %v500 = vsel %vm487, %v479, 0.0
        %501 = vadd.xlane.f32.xlu0 %v500
        %v502 = vpop.xlane.xlu0 %501
        %v503 = vsel %vm487, %v482, 0.0
        %504 = vadd.xlane.f32.xlu0 %v503
        %v505 = vpop.xlane.xlu0 %504
        %v506 = vsel %vm487, %v485, 0.0
        %507 = vadd.xlane.f32.xlu0 %v506
        %v508 = vpop.xlane.xlu0 %507
        %v509 = vrcp.pop 32.0
        %v510 = vmul.f32 32.0, %v509
        %v511 = vsub.f32 1.0, %v510
        %v512 = vmul.f32 %v509, %v511
        %v513 = vadd.f32 %v509, %v512
        %vm514 = vweird.f32 %v509
        %v515 = vsel %vm514, %v509, %v513
        %v516 = vmul.f32 %v490, %v515
        %v517 = vmul.f32 %v493, %v515
        %v518 = vmul.f32 %v496, %v515
        %v519 = vmul.f32 %v499, %v515
        %v520 = vmul.f32 %v502, %v515
        %v521 = vmul.f32 %v505, %v515
        %v522 = vmul.f32 %v508, %v515
        %v523 = vsub.f32 %v467, %v516
        %v524 = vsub.f32 %v470, %v517
        %v525 = vsub.f32 %v473, %v518
        %v526 = vsub.f32 %v476, %v519
        %v527 = vsub.f32 %v479, %v520
        %v528 = vsub.f32 %v482, %v521
        %v529 = vsub.f32 %v485, %v522
        %v530 = vmul.f32 %v523, %v523
        %v531 = vmul.f32 %v524, %v524
        %v532 = vmul.f32 %v525, %v525
        %v533 = vmul.f32 %v526, %v526
        %v534 = vmul.f32 %v527, %v527
        %v535 = vmul.f32 %v528, %v528
        %v536 = vmul.f32 %v529, %v529
        %v537 = vsel %vm487, %v530, 0.0
        %538 = vadd.xlane.f32.xlu0 %v537
        %v539 = vpop.xlane.xlu0 %538
        %v540 = vsel %vm487, %v531, 0.0
        %541 = vadd.xlane.f32.xlu0 %v540
        %v542 = vpop.xlane.xlu0 %541
        %v543 = vsel %vm487, %v532, 0.0
        %544 = vadd.xlane.f32.xlu0 %v543
        %v545 = vpop.xlane.xlu0 %544
        %v546 = vsel %vm487, %v533, 0.0
        %547 = vadd.xlane.f32.xlu0 %v546
        %v548 = vpop.xlane.xlu0 %547
        %v549 = vsel %vm487, %v534, 0.0
        %550 = vadd.xlane.f32.xlu0 %v549
        %v551 = vpop.xlane.xlu0 %550
        %v552 = vsel %vm487, %v535, 0.0
        %553 = vadd.xlane.f32.xlu0 %v552
        %v554 = vpop.xlane.xlu0 %553
        %v555 = vsel %vm487, %v536, 0.0
        %556 = vadd.xlane.f32.xlu0 %v555
        %v557 = vpop.xlane.xlu0 %556
        %v558 = vmul.f32 %v539, %v515
        %v559 = vmul.f32 %v542, %v515
        %v560 = vmul.f32 %v545, %v515
        %v561 = vmul.f32 %v548, %v515
        %v562 = vmul.f32 %v551, %v515
        %v563 = vmul.f32 %v554, %v515
        %v564 = vmul.f32 %v557, %v515
        %v565 = vadd.f32 %v558, 1e-05
        %v566 = vadd.f32 %v559, 1e-05
        %v567 = vadd.f32 %v560, 1e-05
        %v568 = vadd.f32 %v561, 1e-05
        %v569 = vadd.f32 %v562, 1e-05
        %v570 = vadd.f32 %v563, 1e-05
        %v571 = vadd.f32 %v564, 1e-05
        %v572 = vrsqrt.pop %v565
        %v573 = vmul.f32 %v572, %v565
        %v574 = vmul.f32 %v573, %v572
        %v575 = vmul.f32 0.5, %v574
        %v576 = vsub.f32 1.5, %v575
        %v577 = vmul.f32 %v572, %v576
        %vm578 = vweird.f32 %v565
        %vm579 = vweird.f32 %v572
        %vm580 = vmor %vm578, %vm579
        %v581 = vsel %vm580, %v572, %v577
        %v582 = vrsqrt.pop %v566
        %v583 = vmul.f32 %v582, %v566
        %v584 = vmul.f32 %v583, %v582
        %v585 = vmul.f32 0.5, %v584
        %v586 = vsub.f32 1.5, %v585
        %v587 = vmul.f32 %v582, %v586
        %vm588 = vweird.f32 %v566
        %vm589 = vweird.f32 %v582
        %vm590 = vmor %vm588, %vm589
        %v591 = vsel %vm590, %v582, %v587
        %v592 = vrsqrt.pop %v567
        %v593 = vmul.f32 %v592, %v567
        %v594 = vmul.f32 %v593, %v592
        %v595 = vmul.f32 0.5, %v594
        %v596 = vsub.f32 1.5, %v595
        %v597 = vmul.f32 %v592, %v596
        %vm598 = vweird.f32 %v567
        %vm599 = vweird.f32 %v592
        %vm600 = vmor %vm598, %vm599
        %v601 = vsel %vm600, %v592, %v597
        %v602 = vrsqrt.pop %v568
        %v603 = vmul.f32 %v602, %v568
        %v604 = vmul.f32 %v603, %v602
        %v605 = vmul.f32 0.5, %v604
        %v606 = vsub.f32 1.5, %v605
        %v607 = vmul.f32 %v602, %v606
        %vm608 = vweird.f32 %v568
        %vm609 = vweird.f32 %v602
        %vm610 = vmor %vm608, %vm609
        %v611 = vsel %vm610, %v602, %v607
        %v612 = vrsqrt.pop %v569
        %v613 = vmul.f32 %v612, %v569
        %v614 = vmul.f32 %v613, %v612
        %v615 = vmul.f32 0.5, %v614
        %v616 = vsub.f32 1.5, %v615
        %v617 = vmul.f32 %v612, %v616
        %vm618 = vweird.f32 %v569
        %vm619 = vweird.f32 %v612
        %vm620 = vmor %vm618, %vm619
        %v621 = vsel %vm620, %v612, %v617
        %v622 = vrsqrt.pop %v570
        %v623 = vmul.f32 %v622, %v570
        %v624 = vmul.f32 %v623, %v622
        %v625 = vmul.f32 0.5, %v624
        %v626 = vsub.f32 1.5, %v625
        %v627 = vmul.f32 %v622, %v626
        %vm628 = vweird.f32 %v570
        %vm629 = vweird.f32 %v622
        %vm630 = vmor %vm628, %vm629
        %v631 = vsel %vm630, %v622, %v627
        %v632 = vrsqrt.pop %v571
        %v633 = vmul.f32 %v632, %v571
        %v634 = vmul.f32 %v633, %v632
        %v635 = vmul.f32 0.5, %v634
        %v636 = vsub.f32 1.5, %v635
        %v637 = vmul.f32 %v632, %v636
        %vm638 = vweird.f32 %v571
        %vm639 = vweird.f32 %v632
        %vm640 = vmor %vm638, %vm639
        %v641 = vsel %vm640, %v632, %v637
        %v642 = vmul.f32 %v523, %v581
        %v643 = vmul.f32 %v524, %v591
        %v644 = vmul.f32 %v525, %v601
        %v645 = vmul.f32 %v526, %v611
        %v646 = vmul.f32 %v527, %v621
        %v647 = vmul.f32 %v528, %v631
        %v648 = vmul.f32 %v529, %v641
        %v649 = vld [vmem:[%s3] sm:$0x1]
        %v651 = vperm.slane %v649, 0
        %v653 = vmul.f32 %v642, %v651
        %v654 = vmul.f32 %v643, %v651
        %v655 = vmul.f32 %v644, %v651
        %v656 = vmul.f32 %v645, %v651
        %v657 = vmul.f32 %v646, %v651
        %v658 = vmul.f32 %v647, %v651
        %v659 = vmul.f32 %v648, %v651
        %v660 = vld [vmem:[%s4] sm:$0x1]
        %v662 = vperm.slane %v660, 0
        %v664 = vadd.f32 %v653, %v662
        %v665 = vadd.f32 %v654, %v662
        %v666 = vadd.f32 %v655, %v662
        %v667 = vadd.f32 %v656, %v662
        %v668 = vadd.f32 %v657, %v662
        %v669 = vadd.f32 %v658, %v662
        %v670 = vadd.f32 %v659, %v662
        %v671 = vtanh.pop %v664
        %v672 = vtanh.pop %v665
        %v673 = vtanh.pop %v666
        %v674 = vtanh.pop %v667
        %v675 = vtanh.pop %v668
        %v676 = vtanh.pop %v669
        %v677 = vtanh.pop %v670
        %v678 = vld [vmem:[%s5] sm:$0xff]
        %v679 = vld [vmem:[%s5 + $0x8] sm:$0xff]
        %v680 = vld [vmem:[%s5 + $0x10] sm:$0xff]
        %v681 = vld [vmem:[%s5 + $0x18] sm:$0xff]
        %v682 = vld [vmem:[%s6] sm:$0x1]
        %v684 = vperm.slane %v682, 0
        %v687 = vsel %vm487, %v671, 0
        %v690 = vsel %vm487, %v672, 0
        %v693 = vsel %vm487, %v673, 0
        %v696 = vsel %vm487, %v674, 0
        %v699 = vsel %vm487, %v675, 0
        %v702 = vsel %vm487, %v676, 0
        %v705 = vsel %vm487, %v677, 0
        %707 = vmatpush.msra.mxu0 0.0
        %708 = vmatpush.msra.mxu0 0.0
        %709 = vmatpush.msra.mxu0 0.0
        %710 = vmatpush.msra.mxu0 0.0
        %711 = vmatpush.msra.mxu0 0.0
        %712 = vmatpush.msra.mxu0 0.0
        %713 = vmatpush.msra.mxu0 0.0
        %714 = vmatpush.msra.mxu0 0.0
        %715 = vmatpush.msra.mxu0 0.0
        %716 = vmatpush.msra.mxu0 0.0
        %717 = vmatpush.msra.mxu0 0.0
        %718 = vmatpush.msra.mxu0 0.0
        %719 = vmatpush.msra.mxu0 %v681
        %720 = vmatpush.msra.mxu0 %v680
        %721 = vmatpush.msra.mxu0 %v679
        %722 = vmatpush.msra.mxu0 %v678
        %723 = vmatmul.f32.gmra.mxu0 %v687
        %v724 = vpop.f32.mrf.mxu0
        %v725 = vadd.f32 %v684, %v724
        %726 = vmatmul.f32.gmra.mxu0 %v690
        %v727 = vpop.f32.mrf.mxu0
        %v728 = vadd.f32 %v684, %v727
        %729 = vmatmul.f32.gmra.mxu0 %v693
        %v730 = vpop.f32.mrf.mxu0
        %v731 = vadd.f32 %v684, %v730
        %732 = vmatmul.f32.gmra.mxu0 %v696
        %v733 = vpop.f32.mrf.mxu0
        %v734 = vadd.f32 %v684, %v733
        %735 = vmatmul.f32.gmra.mxu0 %v699
        %v736 = vpop.f32.mrf.mxu0
        %v737 = vadd.f32 %v684, %v736
        %738 = vmatmul.f32.gmra.mxu0 %v702
        %v739 = vpop.f32.mrf.mxu0
        %v740 = vadd.f32 %v684, %v739
        %741 = vmatmul.f32.gmra.mxu0 %v705
        %v742 = vpop.f32.mrf.mxu0
        %v743 = vadd.f32 %v684, %v742
        %744 = vdwg.mxu0
        %v745 = vmax.f32 %v725, 0.0
        %v746 = vmax.f32 %v728, 0.0
        %v747 = vmax.f32 %v731, 0.0
        %v748 = vmax.f32 %v734, 0.0
        %v749 = vmax.f32 %v737, 0.0
        %v750 = vmax.f32 %v740, 0.0
        %v751 = vmax.f32 %v743, 0.0
        %v752 = vld [vmem:[%s7] sm:$0xff]
        %v753 = vld [vmem:[%s7 + $0x8] sm:$0xff]
        %v754 = vld [vmem:[%s7 + $0x10] sm:$0xff]
        %v755 = vld [vmem:[%s7 + $0x18] sm:$0xff]
        %v756 = vld [vmem:[%s8] sm:$0x1]
        %v758 = vperm.slane %v756, 0
        %v761 = vsel %vm487, %v745, 0
        %v764 = vsel %vm487, %v746, 0
        %v767 = vsel %vm487, %v747, 0
        %v770 = vsel %vm487, %v748, 0
        %v773 = vsel %vm487, %v749, 0
        %v776 = vsel %vm487, %v750, 0
        %v779 = vsel %vm487, %v751, 0
        %781 = vmatpush.msra.mxu0 0.0
        %782 = vmatpush.msra.mxu0 0.0
        %783 = vmatpush.msra.mxu0 0.0
        %784 = vmatpush.msra.mxu0 0.0
        %785 = vmatpush.msra.mxu0 0.0
        %786 = vmatpush.msra.mxu0 0.0
        %787 = vmatpush.msra.mxu0 0.0
        %788 = vmatpush.msra.mxu0 0.0
        %789 = vmatpush.msra.mxu0 0.0
        %790 = vmatpush.msra.mxu0 0.0
        %791 = vmatpush.msra.mxu0 0.0
        %792 = vmatpush.msra.mxu0 0.0
        %793 = vmatpush.msra.mxu0 %v755
        %794 = vmatpush.msra.mxu0 %v754
        %795 = vmatpush.msra.mxu0 %v753
        %796 = vmatpush.msra.mxu0 %v752
        %797 = vmatmul.f32.gmra.mxu0 %v761
        %v798 = vpop.f32.mrf.mxu0
        %v799 = vadd.f32 %v758, %v798
        %800 = vmatmul.f32.gmra.mxu0 %v764
        %v801 = vpop.f32.mrf.mxu0
        %v802 = vadd.f32 %v758, %v801
        %803 = vmatmul.f32.gmra.mxu0 %v767
        %v804 = vpop.f32.mrf.mxu0
        %v805 = vadd.f32 %v758, %v804
        %806 = vmatmul.f32.gmra.mxu0 %v770
        %v807 = vpop.f32.mrf.mxu0
        %v808 = vadd.f32 %v758, %v807
        %809 = vmatmul.f32.gmra.mxu0 %v773
        %v810 = vpop.f32.mrf.mxu0
        %v811 = vadd.f32 %v758, %v810
        %812 = vmatmul.f32.gmra.mxu0 %v776
        %v813 = vpop.f32.mrf.mxu0
        %v814 = vadd.f32 %v758, %v813
        %815 = vmatmul.f32.gmra.mxu0 %v779
        %v816 = vpop.f32.mrf.mxu0
        %v817 = vadd.f32 %v758, %v816
        %818 = vdwg.mxu0
        %v819 = vmax.f32 %v799, 0.0
        %v820 = vmax.f32 %v802, 0.0
        %v821 = vmax.f32 %v805, 0.0
        %v822 = vmax.f32 %v808, 0.0
        %v823 = vmax.f32 %v811, 0.0
        %v824 = vmax.f32 %v814, 0.0
        %v825 = vmax.f32 %v817, 0.0
        %v826 = vld [vmem:[%s9] sm:$0xff]
        %v827 = vld [vmem:[%s9 + $0x8] sm:$0xff]
        %v828 = vld [vmem:[%s9 + $0x10] sm:$0xff]
        %v829 = vld [vmem:[%s9 + $0x18] sm:$0xff]
        %v830 = vld [vmem:[%s10] sm:$0x1]
        %v832 = vperm.slane %v830, 0
        %v835 = vsel %vm487, %v819, 0
        %v838 = vsel %vm487, %v820, 0
        %v841 = vsel %vm487, %v821, 0
        %v844 = vsel %vm487, %v822, 0
        %v847 = vsel %vm487, %v823, 0
        %v850 = vsel %vm487, %v824, 0
        %v853 = vsel %vm487, %v825, 0
        %855 = vmatpush.msra.mxu0 0.0
        %856 = vmatpush.msra.mxu0 0.0
        %857 = vmatpush.msra.mxu0 0.0
        %858 = vmatpush.msra.mxu0 0.0
        %859 = vmatpush.msra.mxu0 0.0
        %860 = vmatpush.msra.mxu0 0.0
        %861 = vmatpush.msra.mxu0 0.0
        %862 = vmatpush.msra.mxu0 0.0
        %863 = vmatpush.msra.mxu0 0.0
        %864 = vmatpush.msra.mxu0 0.0
        %865 = vmatpush.msra.mxu0 0.0
        %866 = vmatpush.msra.mxu0 0.0
        %867 = vmatpush.msra.mxu0 %v829
        %868 = vmatpush.msra.mxu0 %v828
        %869 = vmatpush.msra.mxu0 %v827
        %870 = vmatpush.msra.mxu0 %v826
        %871 = vmatmul.f32.gmra.mxu0 %v835
        %v872 = vpop.f32.mrf.mxu0
        %v873 = vadd.f32 %v832, %v872
        %874 = vmatmul.f32.gmra.mxu0 %v838
        %v875 = vpop.f32.mrf.mxu0
        %v876 = vadd.f32 %v832, %v875
        %877 = vmatmul.f32.gmra.mxu0 %v841
        %v878 = vpop.f32.mrf.mxu0
        %v879 = vadd.f32 %v832, %v878
        %880 = vmatmul.f32.gmra.mxu0 %v844
        %v881 = vpop.f32.mrf.mxu0
        %v882 = vadd.f32 %v832, %v881
        %883 = vmatmul.f32.gmra.mxu0 %v847
        %v884 = vpop.f32.mrf.mxu0
        %v885 = vadd.f32 %v832, %v884
        %886 = vmatmul.f32.gmra.mxu0 %v850
        %v887 = vpop.f32.mrf.mxu0
        %v888 = vadd.f32 %v832, %v887
        %889 = vmatmul.f32.gmra.mxu0 %v853
        %v890 = vpop.f32.mrf.mxu0
        %v891 = vadd.f32 %v832, %v890
        %892 = vdwg.mxu0
        %v893 = vtanh.pop %v873
        %v894 = vtanh.pop %v876
        %v895 = vtanh.pop %v879
        %v896 = vtanh.pop %v882
        %v897 = vtanh.pop %v885
        %v898 = vtanh.pop %v888
        %v899 = vtanh.pop %v891
        %vm900 = vcmask 31744
        %901 = vst.msk [vmem:[%s388] sm:$0xff] %vm900, %v893
        %902 = vst.msk [vmem:[%s388 + $0x8] sm:$0xff] %vm900, %v894
        %903 = vst.msk [vmem:[%s388 + $0x10] sm:$0xff] %vm900, %v895
        %904 = vst.msk [vmem:[%s388 + $0x18] sm:$0xff] %vm900, %v896
        %905 = vst.msk [vmem:[%s388 + $0x20] sm:$0xff] %vm900, %v897
        %906 = vst.msk [vmem:[%s388 + $0x28] sm:$0xff] %vm900, %v898
        %907 = vst.msk [vmem:[%s388 + $0x30] sm:$0xff] %vm900, %v899
        %s908 = sand.u32 %s266, 1
        %s909 = sand.u32 %s266, 1
        %s910 = smul.addr %s909, 56
        %s911 = scalar_lea.vmem [#allocation2], %s910
        // Predicated region
        $region65: #{tpu_custom_call.1} parent=63 // pred_check
          %p912 = pneg %p276
        $region66: #{tpu_custom_call.1} parent=63 // pred_check_branch
          %914 = sbr.rel (%p912) target = $region68
        $region67: #{tpu_custom_call.1} parent=63 // pred_region
          %s915 = smul.u32 7, %s22
          %s916 = ssub.s32 13, %s915
          %p917 = scmp.lt.s32.totalorder %s916, 7
          %s918 = scalar_select %p917, %s916, 7
          %s919 = smul.u32 8, %s918
          %p920 = scmp.ne.s32.totalorder 0, %s919
          %s921 = smul.addr %s915, 8
          %s922 = scalar_lea.vmem %s11, %s921
          // Predicated region
          $region69: #{tpu_custom_call.1} parent=67 // pred_check
            %p923 = pneg %p920
          $region70: #{tpu_custom_call.1} parent=67 // pred_check_branch
            %925 = sbr.rel (%p923) target = $region72
          $region71: #{tpu_custom_call.1} parent=67 // pred_region
            // Predicated region
            $region73: #{tpu_custom_call.1} parent=71 // pred_check
              _
            $region74: #{tpu_custom_call.1} parent=71 // pred_check_branch
              %927 = sbr.rel (0) target = $region76
            $region75: #{tpu_custom_call.1} parent=71 // pred_region
              // Predicated region
              $region95: #{tpu_custom_call.1} parent=75 // pred_check
                _
              $region96: #{tpu_custom_call.1} parent=75 // pred_check_branch
                %990 = sbr.rel (0) target = $region98
              $region97: #{tpu_custom_call.1} parent=75 // pred_region
                %s991 = sdiv.u32.pop %s918, 7
                %s992 = srem.u32.pop %s918, 7
                // While loop
                $region99: #{tpu_custom_call.1} parent=97 // loop_pre_header
                  _
                $region100: #{tpu_custom_call.1} parent=97 // loop_header
                  %s994 = sphi 0, %s996
                  %p995 = scmp.ge.s32.totalorder %s994, %s991
                  %s999 = sphi 0, %s1018
                  %s1000 = sphi %s911, %s1021
                  %s1001 = sphi %s922, %s1022
                $region101: #{tpu_custom_call.1} parent=97 // loop_header_branch
                  %998 = sbr.rel (%p995) target = $region105
                $region102: #{tpu_custom_call.1} parent=97 // loop_body
                  %v1002 = vld [vmem:[%s1000] sm:$0xff]
                  %1003 = vst [vmem:[%s1001] sm:$0xff] %v1002
                  %v1004 = vld [vmem:[%s1000 + $0x8] sm:$0xff]
                  %1005 = vst [vmem:[%s1001 + $0x8] sm:$0xff] %v1004
                  %v1006 = vld [vmem:[%s1000 + $0x10] sm:$0xff]
                  %1007 = vst [vmem:[%s1001 + $0x10] sm:$0xff] %v1006
                  %v1008 = vld [vmem:[%s1000 + $0x18] sm:$0xff]
                  %1009 = vst [vmem:[%s1001 + $0x18] sm:$0xff] %v1008
                  %v1010 = vld [vmem:[%s1000 + $0x20] sm:$0xff]
                  %1011 = vst [vmem:[%s1001 + $0x20] sm:$0xff] %v1010
                  %v1012 = vld [vmem:[%s1000 + $0x28] sm:$0xff]
                  %1013 = vst [vmem:[%s1001 + $0x28] sm:$0xff] %v1012
                  %v1014 = vld [vmem:[%s1000 + $0x30] sm:$0xff]
                  %1015 = vst [vmem:[%s1001 + $0x30] sm:$0xff] %v1014
                  %s1016 = sadd.s32 1, %s999
                  %p1017 = scmp.ge.s32.totalorder %s1016, %s991
                  %s1018 = scalar_select %p1017, 0, %s1016
                  %s1019 = smul.u32 %s1018, 56
                  %s1020 = smul.u32 %s1018, 56
                  %s1021 = scalar_lea.vmem %s911, %s1019 [#allocation2]
                  %s1022 = scalar_lea.vmem %s922, %s1020
                $region103: #{tpu_custom_call.1} parent=97 // loop_footer
                  %s996 = sadd.s32 %s994, 1
                $region104: #{tpu_custom_call.1} parent=97 // loop_footer_branch
                  %993 = sbr.rel target = $region100
                $region105: #{tpu_custom_call.1} parent=97 // loop_exit
                  _
                %s1023 = sdiv.u32.pop %s918, 7
                %s1024 = srem.u32.pop %s918, 7
                %s1025 = smul.u32 %s1023, 7
                %s1026 = smul.u32 8, %s1025
                %s1027 = scalar_lea.vmem %s911, %s1026 [#allocation2]
                %s1028 = smul.u32 8, %s1025
                %s1029 = scalar_lea.vmem %s922, %s1028
                // While loop
                $region106: #{tpu_custom_call.1} parent=97 // loop_pre_header
                  _
                $region107: #{tpu_custom_call.1} parent=97 // loop_header
                  %s1031 = sphi 0, %s1033
                  %p1032 = scmp.ge.s32.totalorder %s1031, %s1024
                  %s1036 = sphi 0, %s1043
                  %s1037 = sphi %s1027, %s1046
                  %s1038 = sphi %s1029, %s1047
                $region108: #{tpu_custom_call.1} parent=97 // loop_header_branch
                  %1035 = sbr.rel (%p1032) target = $region112
                $region109: #{tpu_custom_call.1} parent=97 // loop_body
                  %v1039 = vld [vmem:[%s1037] sm:$0xff]
                  %1040 = vst [vmem:[%s1038] sm:$0xff] %v1039
                  %s1041 = sadd.s32 1, %s1036
                  %p1042 = scmp.ge.s32.totalorder %s1041, %s1024
                  %s1043 = scalar_select %p1042, 0, %s1041
                  %s1044 = smul.u32 %s1043, 8
                  %s1045 = smul.u32 %s1043, 8
                  %s1046 = scalar_lea.vmem %s1027, %s1044 [#allocation2]
                  %s1047 = scalar_lea.vmem %s1029, %s1045
                $region110: #{tpu_custom_call.1} parent=97 // loop_footer
                  %s1033 = sadd.s32 %s1031, 1
                $region111: #{tpu_custom_call.1} parent=97 // loop_footer_branch
                  %1030 = sbr.rel target = $region107
                $region112: #{tpu_custom_call.1} parent=97 // loop_exit
                  _
              $region98: #{tpu_custom_call.1} parent=75 // pred_fallthru
                _
              // Predicated region
              $region113: #{tpu_custom_call.1} parent=75 // pred_check
                _
              $region114: #{tpu_custom_call.1} parent=75 // pred_check_branch
                %1049 = sbr.rel target = $region116
              $region115: #{tpu_custom_call.1} parent=75 // pred_region
                _
              $region116: #{tpu_custom_call.1} parent=75 // pred_fallthru
                _
            $region76: #{tpu_custom_call.1} parent=71 // pred_fallthru
              _
            // Predicated region
            $region77: #{tpu_custom_call.1} parent=71 // pred_check
              _
            $region78: #{tpu_custom_call.1} parent=71 // pred_check_branch
              %929 = sbr.rel target = $region80
            $region79: #{tpu_custom_call.1} parent=71 // pred_region
              %s931 = ssub.s32 256, 1
              %s932 = sdiv.u32.pop %s918, 7
              %s933 = srem.u32.pop %s918, 7
              // While loop
              $region81: #{tpu_custom_call.1} parent=79 // loop_pre_header
                _
              $region82: #{tpu_custom_call.1} parent=79 // loop_header
                %s935 = sphi 0, %s937
                %p936 = scmp.ge.s32.totalorder %s935, %s932
                %s940 = sphi 0, %s959
                %s941 = sphi %s911, %s962
                %s942 = sphi %s922, %s963
              $region83: #{tpu_custom_call.1} parent=79 // loop_header_branch
                %939 = sbr.rel (%p936) target = $region87
              $region84: #{tpu_custom_call.1} parent=79 // loop_body
                %v943 = vld [vmem:[%s941] sm:%s931]
                %944 = vst [vmem:[%s942] sm:%s931] %v943
                %v945 = vld [vmem:[%s941 + $0x8] sm:%s931]
                %946 = vst [vmem:[%s942 + $0x8] sm:%s931] %v945
                %v947 = vld [vmem:[%s941 + $0x10] sm:%s931]
                %948 = vst [vmem:[%s942 + $0x10] sm:%s931] %v947
                %v949 = vld [vmem:[%s941 + $0x18] sm:%s931]
                %950 = vst [vmem:[%s942 + $0x18] sm:%s931] %v949
                %v951 = vld [vmem:[%s941 + $0x20] sm:%s931]
                %952 = vst [vmem:[%s942 + $0x20] sm:%s931] %v951
                %v953 = vld [vmem:[%s941 + $0x28] sm:%s931]
                %954 = vst [vmem:[%s942 + $0x28] sm:%s931] %v953
                %v955 = vld [vmem:[%s941 + $0x30] sm:%s931]
                %956 = vst [vmem:[%s942 + $0x30] sm:%s931] %v955
                %s957 = sadd.s32 1, %s940
                %p958 = scmp.ge.s32.totalorder %s957, %s932
                %s959 = scalar_select %p958, 0, %s957
                %s960 = smul.u32 %s959, 56
                %s961 = smul.u32 %s959, 56
                %s962 = scalar_lea.vmem %s911, %s960 [#allocation2]
                %s963 = scalar_lea.vmem %s922, %s961
              $region85: #{tpu_custom_call.1} parent=79 // loop_footer
                %s937 = sadd.s32 %s935, 1
              $region86: #{tpu_custom_call.1} parent=79 // loop_footer_branch
                %934 = sbr.rel target = $region82
              $region87: #{tpu_custom_call.1} parent=79 // loop_exit
                _
              %s964 = sdiv.u32.pop %s918, 7
              %s965 = srem.u32.pop %s918, 7
              %s966 = smul.u32 %s964, 7
              %s967 = smul.u32 8, %s966
              %s968 = scalar_lea.vmem %s911, %s967 [#allocation2]
              %s969 = smul.u32 8, %s966
              %s970 = scalar_lea.vmem %s922, %s969
              // While loop
              $region88: #{tpu_custom_call.1} parent=79 // loop_pre_header
                _
              $region89: #{tpu_custom_call.1} parent=79 // loop_header
                %s972 = sphi 0, %s974
                %p973 = scmp.ge.s32.totalorder %s972, %s965
                %s977 = sphi 0, %s984
                %s978 = sphi %s968, %s987
                %s979 = sphi %s970, %s988
              $region90: #{tpu_custom_call.1} parent=79 // loop_header_branch
                %976 = sbr.rel (%p973) target = $region94
              $region91: #{tpu_custom_call.1} parent=79 // loop_body
                %v980 = vld [vmem:[%s978] sm:%s931]
                %981 = vst [vmem:[%s979] sm:%s931] %v980
                %s982 = sadd.s32 1, %s977
                %p983 = scmp.ge.s32.totalorder %s982, %s965
                %s984 = scalar_select %p983, 0, %s982
                %s985 = smul.u32 %s984, 8
                %s986 = smul.u32 %s984, 8
                %s987 = scalar_lea.vmem %s968, %s985 [#allocation2]
                %s988 = scalar_lea.vmem %s970, %s986
              $region92: #{tpu_custom_call.1} parent=79 // loop_footer
                %s974 = sadd.s32 %s972, 1
              $region93: #{tpu_custom_call.1} parent=79 // loop_footer_branch
                %971 = sbr.rel target = $region89
              $region94: #{tpu_custom_call.1} parent=79 // loop_exit
                _
            $region80: #{tpu_custom_call.1} parent=71 // pred_fallthru
              _
          $region72: #{tpu_custom_call.1} parent=67 // pred_fallthru
            _
          %1050 = vnop
        $region68: #{tpu_custom_call.1} parent=63 // pred_fallthru
          _
      $region64: #{tpu_custom_call.1} parent=5 // pred_fallthru
        _
      %p1051 = scmp.le.s32.totalorder 2, %s17
      // Predicated region
      $region117: #{tpu_custom_call.1} parent=5 // pred_check
        %p1052 = pneg %p1051
      $region118: #{tpu_custom_call.1} parent=5 // pred_check_branch
        %1054 = sbr.rel (%p1052) target = $region120
      $region119: #{tpu_custom_call.1} parent=5 // pred_region
        %s1055 = ssub.s32 %s17, 2
        // Predicated region
        $region121: #{tpu_custom_call.1} parent=119 // pred_check
          %p1056 = pneg %p282
        $region122: #{tpu_custom_call.1} parent=119 // pred_check_branch
          %1058 = sbr.rel (%p1056) target = $region124
        $region123: #{tpu_custom_call.1} parent=119 // pred_region
          %s1059 = sand.u32 %s267, 1
          %s1060 = sand.u32 %s267, 1
          %s1061 = smul.addr %s1060, 56
          %s1062 = scalar_lea.vmem [#allocation2], %s1061
        $region124: #{tpu_custom_call.1} parent=119 // pred_fallthru
          _
      $region120: #{tpu_custom_call.1} parent=5 // pred_fallthru
        _
    $region6: #{tpu_custom_call.1} parent=1 // loop_footer
      %s21 = sadd.s32 1, %s17
    $region7: #{tpu_custom_call.1} parent=1 // loop_footer_branch
      %16 = sbr.rel target = $region3
    $region8: #{tpu_custom_call.1} parent=1 // loop_exit
      _

</llo_original>
